<compile_context>
chip_gen: v6e
topology: v6e:2x2x1
jax: 0.10.0
libtpu: 0.0.40
codegen_flags: <defaults>
</compile_context>

<pallas_src>
import functools

import jax
import jax.numpy as jnp
from jax.experimental import pallas as pl
from jax.experimental.pallas import tpu as pltpu


def _round_up(x, m):
    return (x + m - 1) // m * m


def _pick_batch_tile(n, v):
    """Smallest TN dividing N with TN*V a multiple of 128 (lane-dense tile).

    Per perf review we deliberately do NOT grow the tile beyond the smallest
    lane-dense size: A_big scales with (TN*V)^2 and the aggregation matmul does
    TN-fold redundant MACs; work is scaled via the grid instead.
    """
    for tn in range(1, n + 1):
        if n % tn == 0 and (tn * v) % 128 == 0:
            return tn
    return n


def _pick_lane_tile(total, cap=2048):
    """Largest multiple of 128 dividing `total`, capped at `cap` lanes.

    Used for the mem-bound BN+ReLU epilogue: wide lane-dense tiles amortize the
    per-grid-step overhead (128-lane tiles only reach ~29% of HBM roofline)."""
    best, t = 128, 128
    while t <= min(total, cap):
        if total % t == 0:
            best = t
        t += 128
    return best


def build_block_adjacency(adj, batch_tile, dtype=jnp.float32):
    """[K, V, V] -> [K, TN*V, TN*V] block-diagonal adjacency.

    a_big[k, (j, v), (l, w)] = adj[k, v, w] * (j == l).
    adj is a module parameter; build this ONCE per (adj, batch_tile) and pass
    it to gcn_block -- rebuilding it every forward is pure overhead.
    """
    K, V, _ = adj.shape
    eye = jnp.eye(batch_tile, dtype=adj.dtype)
    a_big = jnp.einsum('kvw,jl->kjvlw', adj, eye)
    return a_big.reshape(K, batch_tile * V, batch_tile * V).astype(dtype)


def _conv_agg_kernel(x_ref, w_ref, a_ref, out_ref, stats_ref, *,
                     K, C_out, inv_lanes):
    """Fused 1x1 conv (bias folded in) + K-way graph aggregation, one batch tile.

    x_ref:     [C_in_p, LT]       channel-major activations (row C_in == 1.0)
    w_ref:     [K*C_out, C_in_p]  stacked conv weight, bias in column C_in
    a_ref:     [K, LT, LT]        per-k block-diagonal adjacency
    out_ref:   [C_out, LT]        pre-BN output tile (lane-dense store)
    stats_ref: [1, C_out, 2]      per-tile (mean, M2) per channel
    """
    x = x_ref[...]

    # One stacked conv matmul (bias included via the ones channel). f32 acc.
    y = jnp.dot(w_ref[...], x, preferred_element_type=jnp.float32)  # [K*C_out, LT]

    # K accumulating aggregation dots against the block-diagonal slices:
    # no concatenate, no single deep matmul -- same contraction depth with
    # zero layout ops (sublane slices of y are 8-row aligned).
    a_dtype = a_ref.dtype
    acc = jnp.dot(y[0:C_out].astype(a_dtype), a_ref[0],
                  preferred_element_type=jnp.float32)
    for k in range(1, K):  # K is small & static -> unrolled
        acc += jnp.dot(y[k * C_out:(k + 1) * C_out].astype(a_dtype), a_ref[k],
                       preferred_element_type=jnp.float32)

    out_ref[...] = acc.astype(out_ref.dtype)

    # Per-tile BatchNorm partials: (mean, M2) from the f32 accumulator
    # (numerically stable; combined exactly on the host). Single packed store.
    mean_t = jnp.sum(acc, axis=1, keepdims=True) * inv_lanes        # [C_out, 1]
    d = acc - mean_t
    m2_t = jnp.sum(d * d, axis=1, keepdims=True)                    # [C_out, 1]
    stats_ref[...] = jnp.concatenate([mean_t, m2_t], axis=-1)[None]


def _bn_relu_kernel(x_ref, scale_ref, shift_ref, o_ref):
    """Per-channel FMA (precomputed BN scale/shift) + ReLU, wide lane-dense tiles."""
    x = x_ref[...].astype(jnp.float32)
    o_ref[...] = jnp.maximum(x * scale_ref[...] + shift_ref[...],
                             0.0).astype(o_ref.dtype)


def gcn_block(x, w, b, adj, gamma, beta, *, kernel_size, out_channels,
              eps=1e-5, a_big=None, compute_dtype=jnp.float32,
              agg_dtype=jnp.float32, intermediate_dtype=jnp.float32):
    """Fused GCNBlock forward. Returns (y [N, C_out, V], adj) like the module.

    x: [N, C_in, V]   w: [K*C_out, C_in] (Conv1d weight, kernel_size=1)
    b: [K*C_out]      adj: [K, V, V]     gamma/beta: [C_out]

    a_big: optional precomputed build_block_adjacency(adj, TN); cache it per
           (adj, TN) so it is not rebuilt every forward.
    compute_dtype: conv matmul input dtype. bf16 works on v5e/v6e/v7x (all
                   accumulation stays f32); keep f32 for tight tolerances.
    agg_dtype: adjacency / aggregation matmul input dtype (keep f32 for
               accuracy; bf16 halves A_big bytes on bandwidth-bound v5e).
    intermediate_dtype: dtype of the pre-BN intermediate written to HBM
                        between the two kernels (bf16 halves that round trip;
                        BN stats come from the f32 accumulator, so they stay
                        exact either way).
    """
    # TODO(synk): 4-D per-sample adjacency path ('nkcv,nkvw->ncw') not
    #             implemented; this kernel covers the shared [K, V, V] case.
    # TODO(synk): eval-mode running_mean/running_var are not updated; only
    #             training-mode batch statistics are produced.
    K, C_out = kernel_size, out_channels
    N, C_in, V = x.shape

    # --- host-side layout plumbing ------------------------------------------
    TN = _pick_batch_tile(N, V)          # samples per grid step (kept minimal)
    LT = TN * V                          # lanes per grid step
    if LT % 128 != 0:
        raise ValueError(f"cannot form a lane-dense batch tile for N={N}, V={V}")
    if 2 * K * LT * LT * jnp.dtype(agg_dtype).itemsize > 8 * 1024 * 1024:
        raise ValueError(f"block-diagonal adjacency too large (LT={LT}); "
                         "pad N or V so a smaller lane-dense tile exists")
    NT = N // TN

    # Channel-major [C_in_p, N*V]: batch folded into lanes, plus a constant-1
    # channel at row C_in so the Conv1d bias folds into the matmul.
    C_in_p = _round_up(C_in + 1, 8)
    x_cm = jnp.transpose(x, (1, 0, 2)).reshape(C_in, N * V)
    x_cm = jnp.concatenate(
        [x_cm,
         jnp.ones((1, N * V), x_cm.dtype),
         jnp.zeros((C_in_p - C_in - 1, N * V), x_cm.dtype)],
        axis=0).astype(compute_dtype)

    # Stacked conv weight [K*C_out, C_in_p] with the bias in column C_in.
    w_s = jnp.concatenate(
        [w.astype(jnp.float32),
         b.astype(jnp.float32)[:, None],
         jnp.zeros((K * C_out, C_in_p - C_in - 1), jnp.float32)],
        axis=1).astype(compute_dtype)

    if a_big is None:
        a_big = build_block_adjacency(adj, TN, dtype=agg_dtype)
    else:
        a_big = a_big.astype(agg_dtype)

    cparams = pltpu.CompilerParams(
        dimension_semantics=("parallel",),
        vmem_limit_bytes=32 * 1024 * 1024)

    # --- kernel 1: conv + aggregation + per-tile BN partials -----------------
    # Note (v7x): w_s / a_big have constant index maps; they could be
    # single-buffered (pipeline_mode=pl.Buffered(1)) to shave VMEM, but with
    # LT capped at 128 their footprint (~0.4 MiB total) is already negligible.
    out_pre, stats = pl.pallas_call(
        functools.partial(_conv_agg_kernel, K=K, C_out=C_out,
                          inv_lanes=1.0 / LT),
        grid=(NT,),
        in_specs=[
            pl.BlockSpec((C_in_p, LT), lambda t: (0, t)),
            pl.BlockSpec((K * C_out, C_in_p), lambda t: (0, 0)),
            pl.BlockSpec((K, LT, LT), lambda t: (0, 0, 0)),
        ],
        out_specs=[
            pl.BlockSpec((C_out, LT), lambda t: (0, t)),
            pl.BlockSpec((1, C_out, 2), lambda t: (t, 0, 0)),
        ],
        out_shape=[
            jax.ShapeDtypeStruct((C_out, N * V), intermediate_dtype),
            jax.ShapeDtypeStruct((NT, C_out, 2), jnp.float32),
        ],
        compiler_params=cparams,
    )(x_cm, w_s, a_big)

    # --- finalize BN stats: exact equal-count combine of (mean, M2) ----------
    tile_mean = stats[:, :, 0]                                  # [NT, C_out]
    tile_m2 = stats[:, :, 1]                                    # [NT, C_out]
    mean = jnp.mean(tile_mean, axis=0)                          # [C_out]
    m2 = jnp.sum(tile_m2, axis=0) + float(LT) * jnp.sum(
        (tile_mean - mean[None, :]) ** 2, axis=0)
    var = m2 / float(N * V)
    inv = jax.lax.rsqrt(var + eps)
    g32 = gamma.astype(jnp.float32)
    scale = (g32 * inv).reshape(C_out, 1)
    shift = (beta.astype(jnp.float32) - mean * g32 * inv).reshape(C_out, 1)

    # --- kernel 2: BN scale/shift + ReLU epilogue, wide mem-bound tiles ------
    LT2 = _pick_lane_tile(N * V)
    NT2 = (N * V) // LT2
    y_cm = pl.pallas_call(
        _bn_relu_kernel,
        grid=(NT2,),
        in_specs=[
            pl.BlockSpec((C_out, LT2), lambda t: (0, t)),
            pl.BlockSpec((C_out, 1), lambda t: (0, 0)),
            pl.BlockSpec((C_out, 1), lambda t: (0, 0)),
        ],
        out_specs=pl.BlockSpec((C_out, LT2), lambda t: (0, t)),
        out_shape=jax.ShapeDtypeStruct((C_out, N * V), jnp.float32),
        compiler_params=cparams,
    )(out_pre, scale, shift)

    # Back to the module's [N, C_out, V] layout.
    y = jnp.transpose(y_cm.reshape(C_out, N, V), (1, 0, 2))
    return y, adj


def _reference(x, w, b, adj, gamma, beta, kernel_size, out_channels, eps=1e-5):
    """Plain-JAX reference matching the PyTorch module (training-mode BN)."""
    N, _, V = x.shape
    y = jnp.einsum('oc,ncv->nov', w, x) + b[None, :, None]
    y = y.reshape(N, kernel_size, out_channels, V)
    out = jnp.einsum('nkcv,kvw->ncw', y, adj)
    mean = jnp.mean(out, axis=(0, 2), keepdims=True)
    var = jnp.mean((out - mean) ** 2, axis=(0, 2), keepdims=True)
    out = (out - mean) * jax.lax.rsqrt(var + eps)
    out = out * gamma[None, :, None] + beta[None, :, None]
    return jnp.maximum(out, 0.0)


if __name__ == "__main__":
    # N=32, V=16 -> TN=8 (128-lane tiles), NT=4 grid steps (>=2 per v7x core).
    N, C_in, C_out, K, V = 32, 4, 8, 3, 16

    key = jax.random.PRNGKey(0)
    kx, kw, kb, ka, kg, kbt = jax.random.split(key, 6)

    x = jax.random.normal(kx, (N, C_in, V), dtype=jnp.float32)
    adj = jax.random.normal(ka, (K, V, V), dtype=jnp.float32)
    w = 0.1 * jax.random.normal(kw, (K * C_out, C_in), dtype=jnp.float32)
    b = 0.1 * jax.random.normal(kb, (K * C_out,), dtype=jnp.float32)
    gamma = 1.0 + 0.1 * jax.random.normal(kg, (C_out,), dtype=jnp.float32)
    beta = 0.1 * jax.random.normal(kbt, (C_out,), dtype=jnp.float32)

    # Block-diagonal adjacency built once per (adj, TN) and reused (hoisted
    # out of the per-forward path).
    a_big = build_block_adjacency(adj, _pick_batch_tile(N, V))

    out, adj_out = gcn_block(x, w, b, adj, gamma, beta,
                             kernel_size=K, out_channels=C_out, a_big=a_big)
    out = jax.block_until_ready(out)

    ref = _reference(x, w, b, adj, gamma, beta, K, C_out)
    assert out.shape == (N, C_out, V)
    assert jnp.allclose(out, ref, atol=1e-3, rtol=1e-3), "mismatch vs reference"

    print("KERNEL_OK")
</pallas_src>

<mosaic_0001>
module attributes {stable_mosaic.version = 11 : i64} {
  func.func @_conv_agg_kernel(%arg0: i32, %arg1: memref<8x128xf32, #tpu.memory_space<vmem>>, %arg2: memref<24x8xf32, #tpu.memory_space<vmem>>, %arg3: memref<3x128x128xf32, #tpu.memory_space<vmem>>, %arg4: memref<8x128xf32, #tpu.memory_space<vmem>>, %arg5: memref<1x8x2xf32, #tpu.memory_space<vmem>>) attributes {dimension_semantics = [#tpu.dimension_semantics<parallel>], iteration_bounds = array<i64: 4>, scalar_prefetch = 0 : i64, scratch_operands = 0 : i64, tpu.core_type = #tpu.core_type<tc>, window_params = [{transform_indices = @transform_0, window_bounds = array<i64: 8, 128>}, {pipeline_mode = #tpu.pipeline_mode<synchronous>, transform_indices = @transform_1, window_bounds = array<i64: 24, 8>}, {pipeline_mode = #tpu.pipeline_mode<synchronous>, transform_indices = @transform_2, window_bounds = array<i64: 3, 128, 128>}, {transform_indices = @transform_3, window_bounds = array<i64: 8, 128>}, {transform_indices = @transform_4, window_bounds = array<i64: 1, 8, 2>}]} {
    %c0 = arith.constant 0 : index
    %c0_0 = arith.constant 0 : index
    %0 = vector.load %arg1[%c0, %c0_0] : memref<8x128xf32, #tpu.memory_space<vmem>>, vector<8x128xf32>
    %c0_1 = arith.constant 0 : index
    %c0_2 = arith.constant 0 : index
    %1 = vector.load %arg2[%c0_1, %c0_2] : memref<24x8xf32, #tpu.memory_space<vmem>>, vector<24x8xf32>
    %cst = arith.constant dense<0.000000e+00> : vector<24x128xf32>
    %2 = tpu.matmul %1, %0, %cst {dimension_numbers = #tpu.dot_dimension_numbers<[1], [0], [0], [1], [0, 0, 1, 1], [], []>} : vector<24x8xf32>, vector<8x128xf32>, vector<24x128xf32> -> vector<24x128xf32>
    %3 = vector.extract_strided_slice %2 {offsets = [0, 0], sizes = [8, 128], strides = [1, 1]} : vector<24x128xf32> to vector<8x128xf32>
    %c0_3 = arith.constant 0 : index
    %c0_4 = arith.constant 0 : index
    %c0_5 = arith.constant 0 : index
    %4 = vector.load %arg3[%c0_3, %c0_4, %c0_5] : memref<3x128x128xf32, #tpu.memory_space<vmem>>, vector<1x128x128xf32>
    %5 = vector.shape_cast %4 : vector<1x128x128xf32> to vector<128x128xf32>
    %cst_6 = arith.constant dense<0.000000e+00> : vector<8x128xf32>
    %6 = tpu.matmul %3, %5, %cst_6 {dimension_numbers = #tpu.dot_dimension_numbers<[1], [0], [0], [1], [0, 0, 1, 1], [], []>} : vector<8x128xf32>, vector<128x128xf32>, vector<8x128xf32> -> vector<8x128xf32>
    %7 = vector.extract_strided_slice %2 {offsets = [8, 0], sizes = [8, 128], strides = [1, 1]} : vector<24x128xf32> to vector<8x128xf32>
    %c1 = arith.constant 1 : index
    %c0_7 = arith.constant 0 : index
    %c0_8 = arith.constant 0 : index
    %8 = vector.load %arg3[%c1, %c0_7, %c0_8] : memref<3x128x128xf32, #tpu.memory_space<vmem>>, vector<1x128x128xf32>
    %9 = vector.shape_cast %8 : vector<1x128x128xf32> to vector<128x128xf32>
    %cst_9 = arith.constant dense<0.000000e+00> : vector<8x128xf32>
    %10 = tpu.matmul %7, %9, %cst_9 {dimension_numbers = #tpu.dot_dimension_numbers<[1], [0], [0], [1], [0, 0, 1, 1], [], []>} : vector<8x128xf32>, vector<128x128xf32>, vector<8x128xf32> -> vector<8x128xf32>
    %11 = arith.addf %6, %10 : vector<8x128xf32>
    %12 = vector.extract_strided_slice %2 {offsets = [16, 0], sizes = [8, 128], strides = [1, 1]} : vector<24x128xf32> to vector<8x128xf32>
    %c2 = arith.constant 2 : index
    %c0_10 = arith.constant 0 : index
    %c0_11 = arith.constant 0 : index
    %13 = vector.load %arg3[%c2, %c0_10, %c0_11] : memref<3x128x128xf32, #tpu.memory_space<vmem>>, vector<1x128x128xf32>
    %14 = vector.shape_cast %13 : vector<1x128x128xf32> to vector<128x128xf32>
    %cst_12 = arith.constant dense<0.000000e+00> : vector<8x128xf32>
    %15 = tpu.matmul %12, %14, %cst_12 {dimension_numbers = #tpu.dot_dimension_numbers<[1], [0], [0], [1], [0, 0, 1, 1], [], []>} : vector<8x128xf32>, vector<128x128xf32>, vector<8x128xf32> -> vector<8x128xf32>
    %16 = arith.addf %11, %15 : vector<8x128xf32>
    %c0_13 = arith.constant 0 : index
    %c0_14 = arith.constant 0 : index
    %17 = vector.load %arg4[%c0_13, %c0_14] : memref<8x128xf32, #tpu.memory_space<vmem>>, vector<8x128xf32>
    tpu.vector_store %arg4[%c0_13, %c0_14], %16 {strides = array<i32>} : memref<8x128xf32, #tpu.memory_space<vmem>>, vector<8x128xf32>,
    %cst_15 = arith.constant dense<0.000000e+00> : vector<8xf32>
    %18 = vector.multi_reduction <add>, %16, %cst_15 [1] : vector<8x128xf32> to vector<8xf32>
    %19 = vector.shape_cast %18 : vector<8xf32> to vector<8x1xf32>
    %cst_16 = arith.constant 7.812500e-03 : f32
    %20 = vector.broadcast %cst_16 : f32 to vector<8x1xf32>
    %21 = arith.mulf %19, %20 : vector<8x1xf32>
    %22 = vector.broadcast %21 : vector<8x1xf32> to vector<8x128xf32>
    %23 = arith.subf %16, %22 : vector<8x128xf32>
    %24 = arith.mulf %23, %23 : vector<8x128xf32>
    %cst_17 = arith.constant dense<0.000000e+00> : vector<8xf32>
    %25 = vector.multi_reduction <add>, %24, %cst_17 [1] : vector<8x128xf32> to vector<8xf32>
    %26 = vector.shape_cast %25 : vector<8xf32> to vector<8x1xf32>
    %27 = tpu.concatenate %21, %26 in 1 : vector<8x1xf32>, vector<8x1xf32> -> vector<8x2xf32>
    %28 = vector.shape_cast %27 : vector<8x2xf32> to vector<1x8x2xf32>
    %c0_18 = arith.constant 0 : index
    %c0_19 = arith.constant 0 : index
    %c0_20 = arith.constant 0 : index
    %29 = vector.load %arg5[%c0_18, %c0_19, %c0_20] : memref<1x8x2xf32, #tpu.memory_space<vmem>>, vector<1x8x2xf32>
    tpu.vector_store %arg5[%c0_18, %c0_19, %c0_20], %28 {strides = array<i32>} : memref<1x8x2xf32, #tpu.memory_space<vmem>>, vector<1x8x2xf32>,
    return
  }
  func.func @transform_0(%arg0: i32) -> (i32, i32) {
    %c0_i32 = arith.constant 0 : i32
    %c0_i32_0 = arith.constant 0 : i32
    return %c0_i32, %arg0 : i32, i32
  }
  func.func @transform_1(%arg0: i32) -> (i32, i32) {
    %c0_i32 = arith.constant 0 : i32
    %c0_i32_0 = arith.constant 0 : i32
    %c0_i32_1 = arith.constant 0 : i32
    return %c0_i32, %c0_i32_0 : i32, i32
  }
  func.func @transform_2(%arg0: i32) -> (i32, i32, i32) {
    %c0_i32 = arith.constant 0 : i32
    %c0_i32_0 = arith.constant 0 : i32
    %c0_i32_1 = arith.constant 0 : i32
    %c0_i32_2 = arith.constant 0 : i32
    return %c0_i32, %c0_i32_0, %c0_i32_1 : i32, i32, i32
  }
  func.func @transform_3(%arg0: i32) -> (i32, i32) {
    %c0_i32 = arith.constant 0 : i32
    %c0_i32_0 = arith.constant 0 : i32
    return %c0_i32, %arg0 : i32, i32
  }
  func.func @transform_4(%arg0: i32) -> (i32, i32, i32) {
    %c0_i32 = arith.constant 0 : i32
    %c0_i32_0 = arith.constant 0 : i32
    %c0_i32_1 = arith.constant 0 : i32
    return %arg0, %c0_i32, %c0_i32_0 : i32, i32, i32
  }
}

</mosaic_0001>

<llo_original>
// kernel: tpu_custom_call.1
$region0: #{tpu_custom_call.1}
  #allocation0 [shape = 'u32[]', space=smem, size = 0x4, offset = 0x4, fixed_abs, tag = 'smem constant byte address 0x4 - core index']
  #allocation1 [shape = 'u32[144,128]{1,0:T(1,128)}', space=vmem, size = 0x12000, scoped, tag = 'internal scratch']
  %s0 = inlined_call_operand.vmem [shape: f32[8,512], index: 0, kind: input, shape index: {}]
  %s1 = inlined_call_operand.vmem [shape: f32[24,8], index: 1, kind: input, shape index: {}]
  %s2 = inlined_call_operand.hbm [shape: f32[3,128,128], index: 2, kind: input, shape index: {}]
  %s3 = inlined_call_operand.hbm [shape: f32[8,512], index: 3, kind: output, shape index: {0}]
  %s4 = inlined_call_operand.vmem [shape: f32[4,8,2], index: 4, kind: output, shape index: {1}]
  %5 = xla_tuple %s3, %s4
  %s6 = sld [smem:[#allocation0]]
  $region57: #{tpu_custom_call.1} parent=0
    _
  %s8 = ssub.s32 1, %s6
  %s9 = scalar_select 0, %s8, %s6
  $region1: #{tpu_custom_call.1} parent=0
    #allocation2 [shape = 'u8[196608]{0}', space=vmem, size = 0x30000, scoped, tag = 'input window, operand 2, single buffered']
    #allocation3 [shape = 's32[2]{0}', space=sflag, size = 0x8, scoped, tag = 'scoped memory for tpu_custom_call.1']
    #allocation4 [shape = 's32[2]{0}', space=sflag, size = 0x8, scoped, tag = 'scoped memory for tpu_custom_call.1']
    #allocation5 [shape = 'u8[8192]{0}', space=vmem, size = 0x2000, scoped, tag = 'output window, operand 0']
    %10 = vsyncpa [#allocation3], 0
    %11 = vsyncpa [#allocation4], 0
    %s12 = scalar_lea.sflag [#allocation4], 1
    %13 = vsyncpa %s12, 0
    loop: start=0, step=1, limit=6
    $region2: #{tpu_custom_call.1} parent=1 // loop_pre_header
      _
    $region3: #{tpu_custom_call.1} parent=1 // loop_header
      %s15 = sphi 0, %s19
      %p16 = scmp.ge.s32.totalorder %s15, 6
      %s25 = sphi 0, %s27
      %s28 = sphi 0, %s25
      %s29 = sphi 0, %s28
      %s45 = sphi 0, %s29
      %s49 = sphi 0, %s49
      %s51 = sphi 0, %s49
      %s52 = sphi 0, %s51
      %s66 = sphi 0, %s52
      %s70 = sphi 0, %s70
      %s72 = sphi 0, %s70
      %s73 = sphi 0, %s72
      %s87 = sphi 0, %s73
      %s93 = sphi 0, %s95
      %s96 = sphi 0, %s93
      %s97 = sphi 0, %s96
      %s113 = sphi 0, %s97
      %s119 = sphi 0, %s121
      %s122 = sphi 0, %s119
      %s123 = sphi 0, %s122
      %s139 = sphi 0, %s123
    $region4: #{tpu_custom_call.1} parent=1 // loop_header_branch
      %18 = sbr.rel (%p16) target = $region8
    $region5: #{tpu_custom_call.1} parent=1 // loop_body
      %s20 = ssub.s32 %s15, 1
      %s21 = ssub.s32 %s15, 2
      %s22 = sadd.s32 %s15, 1
      %s23 = ssub.s32 %s15, %s22
      %p24 = scmp.eq.s32.totalorder %s23, 0
      %s26 = sadd.s32 %s25, 1
      %s27 = scalar_select %p24, %s25, %s26
      %p30 = pneg %p24
      %p31 = scmp.eq.s32.totalorder %s15, 3
      %p32 = por %p30, %p31
      %p33 = scmp.ne.s32.totalorder %s25, %s28
      %p34 = scmp.eq.s32.totalorder %s15, 0
      %p35 = por %p33, %p34
      %p36 = scmp.ne.s32.totalorder %s25, %s28
      %p37 = scmp.eq.s32.totalorder %s20, 3
      %p38 = por %p36, %p37
      %p39 = scmp.ne.s32.totalorder %s28, %s29
      %p40 = scmp.eq.s32.totalorder %s20, 0
      %p41 = por %p39, %p40
      %p42 = scmp.ne.s32.totalorder %s28, %s29
      %p43 = scmp.eq.s32.totalorder %s21, 3
      %p44 = por %p42, %p43
      %p46 = scmp.ne.s32.totalorder %s29, %s45
      %p47 = scmp.eq.s32.totalorder %s21, 0
      %p48 = por %p46, %p47
      %s50 = sadd.s32 %s49, 1
      %p53 = scmp.eq.s32.totalorder %s15, 3
      %p54 = scmp.ne.s32.totalorder %s49, %s51
      %p55 = scmp.eq.s32.totalorder %s15, 0
      %p56 = por %p54, %p55
      %p57 = scmp.ne.s32.totalorder %s49, %s51
      %p58 = scmp.eq.s32.totalorder %s20, 3
      %p59 = por %p57, %p58
      %p60 = scmp.ne.s32.totalorder %s51, %s52
      %p61 = scmp.eq.s32.totalorder %s20, 0
      %p62 = por %p60, %p61
      %p63 = scmp.ne.s32.totalorder %s51, %s52
      %p64 = scmp.eq.s32.totalorder %s21, 3
      %p65 = por %p63, %p64
      %p67 = scmp.ne.s32.totalorder %s52, %s66
      %p68 = scmp.eq.s32.totalorder %s21, 0
      %p69 = por %p67, %p68
      %s71 = sadd.s32 %s70, 1
      %p74 = scmp.eq.s32.totalorder %s15, 3
      %p75 = scmp.ne.s32.totalorder %s70, %s72
      %p76 = scmp.eq.s32.totalorder %s15, 0
      %p77 = por %p75, %p76
      %p78 = scmp.ne.s32.totalorder %s70, %s72
      %p79 = scmp.eq.s32.totalorder %s20, 3
      %p80 = por %p78, %p79
      %p81 = scmp.ne.s32.totalorder %s72, %s73
      %p82 = scmp.eq.s32.totalorder %s20, 0
      %p83 = por %p81, %p82
      %p84 = scmp.ne.s32.totalorder %s72, %s73
      %p85 = scmp.eq.s32.totalorder %s21, 3
      %p86 = por %p84, %p85
      %p88 = scmp.ne.s32.totalorder %s73, %s87
      %p89 = scmp.eq.s32.totalorder %s21, 0
      %p90 = por %p88, %p89
      %s91 = ssub.s32 %s15, %s22
      %p92 = scmp.eq.s32.totalorder %s91, 0
      %s94 = sadd.s32 %s93, 1
      %s95 = scalar_select %p92, %s93, %s94
      %p98 = pneg %p92
      %p99 = scmp.eq.s32.totalorder %s15, 3
      %p100 = por %p98, %p99
      %p101 = scmp.ne.s32.totalorder %s93, %s96
      %p102 = scmp.eq.s32.totalorder %s15, 0
      %p103 = por %p101, %p102
      %p104 = scmp.ne.s32.totalorder %s93, %s96
      %p105 = scmp.eq.s32.totalorder %s20, 3
      %p106 = por %p104, %p105
      %p107 = scmp.ne.s32.totalorder %s96, %s97
      %p108 = scmp.eq.s32.totalorder %s20, 0
      %p109 = por %p107, %p108
      %p110 = scmp.ne.s32.totalorder %s96, %s97
      %p111 = scmp.eq.s32.totalorder %s21, 3
      %p112 = por %p110, %p111
      %p114 = scmp.ne.s32.totalorder %s97, %s113
      %p115 = scmp.eq.s32.totalorder %s21, 0
      %p116 = por %p114, %p115
      %s117 = ssub.s32 %s15, %s22
      %p118 = scmp.eq.s32.totalorder %s117, 0
      %s120 = sadd.s32 %s119, 1
      %s121 = scalar_select %p118, %s119, %s120
      %p124 = pneg %p118
      %p125 = scmp.eq.s32.totalorder %s15, 3
      %p126 = por %p124, %p125
      %p127 = scmp.ne.s32.totalorder %s119, %s122
      %p128 = scmp.eq.s32.totalorder %s15, 0
      %p129 = por %p127, %p128
      %p130 = scmp.ne.s32.totalorder %s119, %s122
      %p131 = scmp.eq.s32.totalorder %s20, 3
      %p132 = por %p130, %p131
      %p133 = scmp.ne.s32.totalorder %s122, %s123
      %p134 = scmp.eq.s32.totalorder %s20, 0
      %p135 = por %p133, %p134
      %p136 = scmp.ne.s32.totalorder %s122, %s123
      %p137 = scmp.eq.s32.totalorder %s21, 3
      %p138 = por %p136, %p137
      %p140 = scmp.ne.s32.totalorder %s123, %s139
      %p141 = scmp.eq.s32.totalorder %s21, 0
      %p142 = por %p140, %p141
      %p143 = scmp.le.s32.totalorder 1, %s15
      %p144 = scmp.lt.s32.totalorder %s15, 5
      %p145 = pnand %p143, %p144
      %p146 = pneg %p145
      // Predicated region
      $region9: #{tpu_custom_call.1} parent=5 // pred_check
        _
      $region10: #{tpu_custom_call.1} parent=5 // pred_check_branch
        %148 = sbr.rel (%p145) target = $region12
      $region11: #{tpu_custom_call.1} parent=5 // pred_region
        %s149 = ssub.s32 %s15, 1
        // Predicated region
        $region13: #{tpu_custom_call.1} parent=11 // pred_check
          %p150 = pneg %p62
        $region14: #{tpu_custom_call.1} parent=11 // pred_check_branch
          %152 = sbr.rel (%p150) target = $region16
        $region15: #{tpu_custom_call.1} parent=11 // pred_region
          _
        $region16: #{tpu_custom_call.1} parent=11 // pred_fallthru
          _
        // Predicated region
        $region17: #{tpu_custom_call.1} parent=11 // pred_check
          %p153 = pneg %p83
        $region18: #{tpu_custom_call.1} parent=11 // pred_check_branch
          %155 = sbr.rel (%p153) target = $region20
        $region19: #{tpu_custom_call.1} parent=11 // pred_region
          %s157 = ssub.s32 6144, 6144
          %158 = vsyncadd [#allocation3], %s157
          %s159 = sshll.u32 [#allocation2], 4
          %s160 = int_to_ptr.vmem [resolvable:$true] %s159
          %165 = dma.hbm_to_vmem [thread:$0]  %s2, 6144, %s160, [#allocation3], 128, 128, 8
        $region20: #{tpu_custom_call.1} parent=11 // pred_fallthru
          _
      $region12: #{tpu_custom_call.1} parent=5 // pred_fallthru
        _
      %p166 = scmp.lt.s32.totalorder %s15, 4
      // Predicated region
      $region21: #{tpu_custom_call.1} parent=5 // pred_check
        %p167 = pneg %p166
      $region22: #{tpu_custom_call.1} parent=5 // pred_check_branch
        %169 = sbr.rel (%p167) target = $region24
      $region23: #{tpu_custom_call.1} parent=5 // pred_region
        // Predicated region
        $region25: #{tpu_custom_call.1} parent=23 // pred_check
          %p170 = pneg %p35
        $region26: #{tpu_custom_call.1} parent=23 // pred_check_branch
          %172 = sbr.rel (%p170) target = $region28
        $region27: #{tpu_custom_call.1} parent=23 // pred_region
          %p173 = scmp.lt.s32.totalorder %s15, 3
          %s174 = scalar_select %p173, %s15, 3
          %s175 = smul.addr %s174, 8
          %s176 = scalar_lea.vmem %s0, %s175
        $region28: #{tpu_custom_call.1} parent=23 // pred_fallthru
          _
      $region24: #{tpu_custom_call.1} parent=5 // pred_fallthru
        _
      %p177 = scmp.le.s32.totalorder 1, %s15
      %p178 = scmp.lt.s32.totalorder %s15, 5
      %p179 = pnand %p177, %p178
      %p180 = pneg %p179
      // Predicated region
      $region29: #{tpu_custom_call.1} parent=5 // pred_check
        _
      $region30: #{tpu_custom_call.1} parent=5 // pred_check_branch
        %182 = sbr.rel (%p179) target = $region32
      $region31: #{tpu_custom_call.1} parent=5 // pred_region
        %s183 = ssub.s32 %s15, 1
        // Predicated region
        $region33: #{tpu_custom_call.1} parent=31 // pred_check
          %p184 = pneg %p83
        $region34: #{tpu_custom_call.1} parent=31 // pred_check_branch
          %186 = sbr.rel (%p184) target = $region36
        $region35: #{tpu_custom_call.1} parent=31 // pred_region
          %187 = dma.done [#allocation3], 6144
        $region36: #{tpu_custom_call.1} parent=31 // pred_fallthru
          _
        %p188 = scmp.lt.s32.totalorder %s20, 3
        %s189 = scalar_select %p188, %s20, 3
        %s190 = smul.addr %s189, 8
        %s191 = scalar_lea.vmem %s0, %s190
        %p192 = pneg %p41
        %p193 = pneg %p38
        %p194 = pneg %p62
        %p195 = pneg %p59
        %p196 = pneg %p83
        %p197 = pneg %p80
        %p198 = pneg %p109
        %p199 = pneg %p106
        %s200 = sand.u32 %s96, 1
        %s201 = scalar_lea.sflag [#allocation4], %s200
        %s202 = sand.u32 %s96, 1
        %s203 = smul.addr %s202, 8
        %s204 = scalar_lea.vmem [#allocation5], %s203
        %p205 = pneg %p135
        %p206 = pneg %p132
        %p207 = scmp.lt.s32.totalorder %s20, 3
        %s208 = scalar_select %p207, %s20, 3
        %s209 = smul.addr %s208, 8
        %s210 = scalar_lea.vmem %s4, %s209
        %p211 = scmp.lt.s32.totalorder %s20, 3
        %s212 = scalar_select %p211, %s20, 3
        %s213 = smul.addr %s212, 8
        %s214 = scalar_lea.vmem %s0, %s213
        %p215 = scmp.lt.s32.totalorder %s20, 3
        %s216 = scalar_select %p215, %s20, 3
        %s217 = smul.addr %s216, 8
        %s218 = scalar_lea.vmem %s4, %s217
        %v219 = vld [vmem:[%s214] sm:$0xff]
        %v220 = vld [vmem:[%s1] sm:$0xff]
        %v221 = vld [vmem:[%s1 + $0x8] sm:$0xff]
        %v222 = vld [vmem:[%s1 + $0x10] sm:$0xff]
        %vm223 = vcmask 64512
        %v225 = vsel %vm223, %v220, 0
        %v228 = vsel %vm223, %v221, 0
        %v231 = vsel %vm223, %v222, 0
        %233 = vmatprep.subr.mxu0 0.0
        %234 = vmatpush1.msra.mxu0 0.0
        %235 = vmatprep.subr.mxu0 0.0
        %236 = vmatpush1.msra.mxu0 0.0
        %237 = vmatprep.subr.mxu0 0.0
        %238 = vmatpush1.msra.mxu0 0.0
        %239 = vmatprep.subr.mxu0 0.0
        %240 = vmatpush1.msra.mxu0 0.0
        %241 = vmatprep.subr.mxu0 0.0
        %242 = vmatpush1.msra.mxu0 0.0
        %243 = vmatprep.subr.mxu0 0.0
        %244 = vmatpush1.msra.mxu0 0.0
        %245 = vmatprep.subr.mxu0 0.0
        %246 = vmatpush1.msra.mxu0 0.0
        %247 = vmatprep.subr.mxu0 0.0
        %248 = vmatpush1.msra.mxu0 0.0
        %249 = vmatprep.subr.mxu0 0.0
        %250 = vmatpush1.msra.mxu0 0.0
        %251 = vmatprep.subr.mxu0 0.0
        %252 = vmatpush1.msra.mxu0 0.0
        %253 = vmatprep.subr.mxu0 0.0
        %254 = vmatpush1.msra.mxu0 0.0
        %255 = vmatprep.subr.mxu0 0.0
        %256 = vmatpush1.msra.mxu0 0.0
        %257 = vmatprep.subr.mxu0 0.0
        %258 = vmatpush1.msra.mxu0 0.0
        %259 = vmatprep.subr.mxu0 0.0
        %260 = vmatpush1.msra.mxu0 0.0
        %261 = vmatprep.subr.mxu0 0.0
        %262 = vmatpush1.msra.mxu0 0.0
        %263 = vmatprep.subr.mxu0 0.0
        %264 = vmatpush1.msra.mxu0 %v219
        %265 = vmatprep.subr.mxu0 0.0
        %266 = vmatpush2.msra.mxu0 0.0
        %267 = vmatprep.subr.mxu0 0.0
        %268 = vmatpush2.msra.mxu0 0.0
        %269 = vmatprep.subr.mxu0 0.0
        %270 = vmatpush2.msra.mxu0 0.0
        %271 = vmatprep.subr.mxu0 0.0
        %272 = vmatpush2.msra.mxu0 0.0
        %273 = vmatprep.subr.mxu0 0.0
        %274 = vmatpush2.msra.mxu0 0.0
        %275 = vmatprep.subr.mxu0 0.0
        %276 = vmatpush2.msra.mxu0 0.0
        %277 = vmatprep.subr.mxu0 0.0
        %278 = vmatpush2.msra.mxu0 0.0
        %279 = vmatprep.subr.mxu0 0.0
        %280 = vmatpush2.msra.mxu0 0.0
        %281 = vmatprep.subr.mxu0 0.0
        %282 = vmatpush2.msra.mxu0 0.0
        %283 = vmatprep.subr.mxu0 0.0
        %284 = vmatpush2.msra.mxu0 0.0
        %285 = vmatprep.subr.mxu0 0.0
        %286 = vmatpush2.msra.mxu0 0.0
        %287 = vmatprep.subr.mxu0 0.0
        %288 = vmatpush2.msra.mxu0 0.0
        %289 = vmatprep.subr.mxu0 0.0
        %290 = vmatpush2.msra.mxu0 0.0
        %291 = vmatprep.subr.mxu0 0.0
        %292 = vmatpush2.msra.mxu0 0.0
        %293 = vmatprep.subr.mxu0 0.0
        %294 = vmatpush2.msra.mxu0 0.0
        %295 = vmatprep.subr.mxu0 0.0
        %296 = vmatpush2.msra.mxu0 0.0
        %297 = vmatprep.mubr.f32.mxu0 0.0
        %298 = vmatmul.mubr.f32.gmra.mxu0 %v225
        %v299 = vpop.f32.mrf.mxu0
        %v300 = vadd.f32 0.0, %v299
        %v301 = vpop.f32.mrf.mxu0
        %302 = vmatprep.mubr.f32.mxu0 0.0
        %303 = vmatmul.mubr.f32.gmra.mxu0 %v228
        %v304 = vpop.f32.mrf.mxu0
        %v305 = vadd.f32 0.0, %v304
        %v306 = vpop.f32.mrf.mxu0
        %307 = vmatprep.mubr.f32.mxu0 0.0
        %308 = vmatmul.mubr.f32.gmra.mxu0 %v231
        %v309 = vpop.f32.mrf.mxu0
        %v310 = vadd.f32 0.0, %v309
        %v311 = vpop.f32.mrf.mxu0
        %312 = vdwg.mxu0
        %v313 = vld [vmem:[#allocation2] sm:$0xff]
        %v314 = vld [vmem:[#allocation2 + $0x8] sm:$0xff]
        %v315 = vld [vmem:[#allocation2 + $0x10] sm:$0xff]
        %v316 = vld [vmem:[#allocation2 + $0x18] sm:$0xff]
        %v317 = vld [vmem:[#allocation2 + $0x20] sm:$0xff]
        %v318 = vld [vmem:[#allocation2 + $0x28] sm:$0xff]
        %v319 = vld [vmem:[#allocation2 + $0x30] sm:$0xff]
        %v320 = vld [vmem:[#allocation2 + $0x38] sm:$0xff]
        %v321 = vld [vmem:[#allocation2 + $0x40] sm:$0xff]
        %v322 = vld [vmem:[#allocation2 + $0x48] sm:$0xff]
        %v323 = vld [vmem:[#allocation2 + $0x50] sm:$0xff]
        %v324 = vld [vmem:[#allocation2 + $0x58] sm:$0xff]
        %v325 = vld [vmem:[#allocation2 + $0x60] sm:$0xff]
        %v326 = vld [vmem:[#allocation2 + $0x68] sm:$0xff]
        %v327 = vld [vmem:[#allocation2 + $0x70] sm:$0xff]
        %v328 = vld [vmem:[#allocation2 + $0x78] sm:$0xff]
        %s329 = scalar_lea.vmem [#allocation2], 128
        %v330 = vld [vmem:[%s329] sm:$0xff]
        %v331 = vld [vmem:[%s329 + $0x8] sm:$0xff]
        %v332 = vld [vmem:[%s329 + $0x10] sm:$0xff]
        %v333 = vld [vmem:[%s329 + $0x18] sm:$0xff]
        %v334 = vld [vmem:[%s329 + $0x20] sm:$0xff]
        %v335 = vld [vmem:[%s329 + $0x28] sm:$0xff]
        %v336 = vld [vmem:[%s329 + $0x30] sm:$0xff]
        %v337 = vld [vmem:[%s329 + $0x38] sm:$0xff]
        %v338 = vld [vmem:[%s329 + $0x40] sm:$0xff]
        %v339 = vld [vmem:[%s329 + $0x48] sm:$0xff]
        %v340 = vld [vmem:[%s329 + $0x50] sm:$0xff]
        %v341 = vld [vmem:[%s329 + $0x58] sm:$0xff]
        %v342 = vld [vmem:[%s329 + $0x60] sm:$0xff]
        %v343 = vld [vmem:[%s329 + $0x68] sm:$0xff]
        %v344 = vld [vmem:[%s329 + $0x70] sm:$0xff]
        %v345 = vld [vmem:[%s329 + $0x78] sm:$0xff]
        %346 = vmatprep.subr.mxu0 0.0
        %347 = vmatpush1.msra.mxu0 %v345
        %348 = vmatprep.subr.mxu0 0.0
        %349 = vmatpush1.msra.mxu0 %v344
        %350 = vmatprep.subr.mxu0 0.0
        %351 = vmatpush1.msra.mxu0 %v343
        %352 = vmatprep.subr.mxu0 0.0
        %353 = vmatpush1.msra.mxu0 %v342
        %354 = vmatprep.subr.mxu0 0.0
        %355 = vmatpush1.msra.mxu0 %v341
        %356 = vmatprep.subr.mxu0 0.0
        %357 = vmatpush1.msra.mxu0 %v340
        %358 = vmatprep.subr.mxu0 0.0
        %359 = vmatpush1.msra.mxu0 %v339
        %360 = vmatprep.subr.mxu0 0.0
        %361 = vmatpush1.msra.mxu0 %v338
        %362 = vmatprep.subr.mxu0 0.0
        %363 = vmatpush1.msra.mxu0 %v337
        %364 = vmatprep.subr.mxu0 0.0
        %365 = vmatpush1.msra.mxu0 %v336
        %366 = vmatprep.subr.mxu0 0.0
        %367 = vmatpush1.msra.mxu0 %v335
        %368 = vmatprep.subr.mxu0 0.0
        %369 = vmatpush1.msra.mxu0 %v334
        %370 = vmatprep.subr.mxu0 0.0
        %371 = vmatpush1.msra.mxu0 %v333
        %372 = vmatprep.subr.mxu0 0.0
        %373 = vmatpush1.msra.mxu0 %v332
        %374 = vmatprep.subr.mxu0 0.0
        %375 = vmatpush1.msra.mxu0 %v331
        %376 = vmatprep.subr.mxu0 0.0
        %377 = vmatpush1.msra.mxu0 %v330
        %378 = vmatprep.subr.mxu0 0.0
        %379 = vmatpush2.msra.mxu0 0.0
        %380 = vmatprep.subr.mxu0 0.0
        %381 = vmatpush2.msra.mxu0 0.0
        %382 = vmatprep.subr.mxu0 0.0
        %383 = vmatpush2.msra.mxu0 0.0
        %384 = vmatprep.subr.mxu0 0.0
        %385 = vmatpush2.msra.mxu0 0.0
        %386 = vmatprep.subr.mxu0 0.0
        %387 = vmatpush2.msra.mxu0 0.0
        %388 = vmatprep.subr.mxu0 0.0
        %389 = vmatpush2.msra.mxu0 0.0
        %390 = vmatprep.subr.mxu0 0.0
        %391 = vmatpush2.msra.mxu0 0.0
        %392 = vmatprep.subr.mxu0 0.0
        %393 = vmatpush2.msra.mxu0 0.0
        %394 = vmatprep.subr.mxu0 0.0
        %395 = vmatpush2.msra.mxu0 0.0
        %396 = vmatprep.subr.mxu0 0.0
        %397 = vmatpush2.msra.mxu0 0.0
        %398 = vmatprep.subr.mxu0 0.0
        %399 = vmatpush2.msra.mxu0 0.0
        %400 = vmatprep.subr.mxu0 0.0
        %401 = vmatpush2.msra.mxu0 0.0
        %402 = vmatprep.subr.mxu0 0.0
        %403 = vmatpush2.msra.mxu0 0.0
        %404 = vmatprep.subr.mxu0 0.0
        %405 = vmatpush2.msra.mxu0 0.0
        %406 = vmatprep.subr.mxu0 0.0
        %407 = vmatpush2.msra.mxu0 0.0
        %408 = vmatprep.subr.mxu0 0.0
        %409 = vmatpush2.msra.mxu0 0.0
        %410 = vmatprep.mubr.f32.mxu0 0.0
        %411 = vmatmul.mubr.f32.gmra.mxu0 %v305
        %v412 = vpop.f32.mrf.mxu0
        %v413 = vadd.f32 0.0, %v412
        %v414 = vpop.f32.mrf.mxu0
        %415 = vdwg.mxu0
        %416 = vmatprep.subr.mxu0 0.0
        %417 = vmatpush1.msra.mxu0 %v328
        %418 = vmatprep.subr.mxu0 0.0
        %419 = vmatpush1.msra.mxu0 %v327
        %420 = vmatprep.subr.mxu0 0.0
        %421 = vmatpush1.msra.mxu0 %v326
        %422 = vmatprep.subr.mxu0 0.0
        %423 = vmatpush1.msra.mxu0 %v325
        %424 = vmatprep.subr.mxu0 0.0
        %425 = vmatpush1.msra.mxu0 %v324
        %426 = vmatprep.subr.mxu0 0.0
        %427 = vmatpush1.msra.mxu0 %v323
        %428 = vmatprep.subr.mxu0 0.0
        %429 = vmatpush1.msra.mxu0 %v322
        %430 = vmatprep.subr.mxu0 0.0
        %431 = vmatpush1.msra.mxu0 %v321
        %432 = vmatprep.subr.mxu0 0.0
        %433 = vmatpush1.msra.mxu0 %v320
        %434 = vmatprep.subr.mxu0 0.0
        %435 = vmatpush1.msra.mxu0 %v319
        %436 = vmatprep.subr.mxu0 0.0
        %437 = vmatpush1.msra.mxu0 %v318
        %438 = vmatprep.subr.mxu0 0.0
        %439 = vmatpush1.msra.mxu0 %v317
        %440 = vmatprep.subr.mxu0 0.0
        %441 = vmatpush1.msra.mxu0 %v316
        %442 = vmatprep.subr.mxu0 0.0
        %443 = vmatpush1.msra.mxu0 %v315
        %444 = vmatprep.subr.mxu0 0.0
        %445 = vmatpush1.msra.mxu0 %v314
        %446 = vmatprep.subr.mxu0 0.0
        %447 = vmatpush1.msra.mxu0 %v313
        %448 = vmatprep.subr.mxu0 0.0
        %449 = vmatpush2.msra.mxu0 0.0
        %450 = vmatprep.subr.mxu0 0.0
        %451 = vmatpush2.msra.mxu0 0.0
        %452 = vmatprep.subr.mxu0 0.0
        %453 = vmatpush2.msra.mxu0 0.0
        %454 = vmatprep.subr.mxu0 0.0
        %455 = vmatpush2.msra.mxu0 0.0
        %456 = vmatprep.subr.mxu0 0.0
        %457 = vmatpush2.msra.mxu0 0.0
        %458 = vmatprep.subr.mxu0 0.0
        %459 = vmatpush2.msra.mxu0 0.0
        %460 = vmatprep.subr.mxu0 0.0
        %461 = vmatpush2.msra.mxu0 0.0
        %462 = vmatprep.subr.mxu0 0.0
        %463 = vmatpush2.msra.mxu0 0.0
        %464 = vmatprep.subr.mxu0 0.0
        %465 = vmatpush2.msra.mxu0 0.0
        %466 = vmatprep.subr.mxu0 0.0
        %467 = vmatpush2.msra.mxu0 0.0
        %468 = vmatprep.subr.mxu0 0.0
        %469 = vmatpush2.msra.mxu0 0.0
        %470 = vmatprep.subr.mxu0 0.0
        %471 = vmatpush2.msra.mxu0 0.0
        %472 = vmatprep.subr.mxu0 0.0
        %473 = vmatpush2.msra.mxu0 0.0
        %474 = vmatprep.subr.mxu0 0.0
        %475 = vmatpush2.msra.mxu0 0.0
        %476 = vmatprep.subr.mxu0 0.0
        %477 = vmatpush2.msra.mxu0 0.0
        %478 = vmatprep.subr.mxu0 0.0
        %479 = vmatpush2.msra.mxu0 0.0
        %480 = vmatprep.mubr.f32.mxu0 0.0
        %481 = vmatmul.mubr.f32.gmra.mxu0 %v300
        %v482 = vpop.f32.mrf.mxu0
        %v483 = vadd.f32 %v413, %v482
        %v484 = vpop.f32.mrf.mxu0
        %485 = vdwg.mxu0
        %s486 = scalar_lea.vmem [#allocation2], 256
        %v487 = vld [vmem:[%s486] sm:$0xff]
        %v488 = vld [vmem:[%s486 + $0x8] sm:$0xff]
        %v489 = vld [vmem:[%s486 + $0x10] sm:$0xff]
        %v490 = vld [vmem:[%s486 + $0x18] sm:$0xff]
        %v491 = vld [vmem:[%s486 + $0x20] sm:$0xff]
        %v492 = vld [vmem:[%s486 + $0x28] sm:$0xff]
        %v493 = vld [vmem:[%s486 + $0x30] sm:$0xff]
        %v494 = vld [vmem:[%s486 + $0x38] sm:$0xff]
        %v495 = vld [vmem:[%s486 + $0x40] sm:$0xff]
        %v496 = vld [vmem:[%s486 + $0x48] sm:$0xff]
        %v497 = vld [vmem:[%s486 + $0x50] sm:$0xff]
        %v498 = vld [vmem:[%s486 + $0x58] sm:$0xff]
        %v499 = vld [vmem:[%s486 + $0x60] sm:$0xff]
        %v500 = vld [vmem:[%s486 + $0x68] sm:$0xff]
        %v501 = vld [vmem:[%s486 + $0x70] sm:$0xff]
        %v502 = vld [vmem:[%s486 + $0x78] sm:$0xff]
        %503 = vmatprep.subr.mxu0 0.0
        %504 = vmatpush1.msra.mxu0 %v502
        %505 = vmatprep.subr.mxu0 0.0
        %506 = vmatpush1.msra.mxu0 %v501
        %507 = vmatprep.subr.mxu0 0.0
        %508 = vmatpush1.msra.mxu0 %v500
        %509 = vmatprep.subr.mxu0 0.0
        %510 = vmatpush1.msra.mxu0 %v499
        %511 = vmatprep.subr.mxu0 0.0
        %512 = vmatpush1.msra.mxu0 %v498
        %513 = vmatprep.subr.mxu0 0.0
        %514 = vmatpush1.msra.mxu0 %v497
        %515 = vmatprep.subr.mxu0 0.0
        %516 = vmatpush1.msra.mxu0 %v496
        %517 = vmatprep.subr.mxu0 0.0
        %518 = vmatpush1.msra.mxu0 %v495
        %519 = vmatprep.subr.mxu0 0.0
        %520 = vmatpush1.msra.mxu0 %v494
        %521 = vmatprep.subr.mxu0 0.0
        %522 = vmatpush1.msra.mxu0 %v493
        %523 = vmatprep.subr.mxu0 0.0
        %524 = vmatpush1.msra.mxu0 %v492
        %525 = vmatprep.subr.mxu0 0.0
        %526 = vmatpush1.msra.mxu0 %v491
        %527 = vmatprep.subr.mxu0 0.0
        %528 = vmatpush1.msra.mxu0 %v490
        %529 = vmatprep.subr.mxu0 0.0
        %530 = vmatpush1.msra.mxu0 %v489
        %531 = vmatprep.subr.mxu0 0.0
        %532 = vmatpush1.msra.mxu0 %v488
        %533 = vmatprep.subr.mxu0 0.0
        %534 = vmatpush1.msra.mxu0 %v487
        %535 = vmatprep.subr.mxu0 0.0
        %536 = vmatpush2.msra.mxu0 0.0
        %537 = vmatprep.subr.mxu0 0.0
        %538 = vmatpush2.msra.mxu0 0.0
        %539 = vmatprep.subr.mxu0 0.0
        %540 = vmatpush2.msra.mxu0 0.0
        %541 = vmatprep.subr.mxu0 0.0
        %542 = vmatpush2.msra.mxu0 0.0
        %543 = vmatprep.subr.mxu0 0.0
        %544 = vmatpush2.msra.mxu0 0.0
        %545 = vmatprep.subr.mxu0 0.0
        %546 = vmatpush2.msra.mxu0 0.0
        %547 = vmatprep.subr.mxu0 0.0
        %548 = vmatpush2.msra.mxu0 0.0
        %549 = vmatprep.subr.mxu0 0.0
        %550 = vmatpush2.msra.mxu0 0.0
        %551 = vmatprep.subr.mxu0 0.0
        %552 = vmatpush2.msra.mxu0 0.0
        %553 = vmatprep.subr.mxu0 0.0
        %554 = vmatpush2.msra.mxu0 0.0
        %555 = vmatprep.subr.mxu0 0.0
        %556 = vmatpush2.msra.mxu0 0.0
        %557 = vmatprep.subr.mxu0 0.0
        %558 = vmatpush2.msra.mxu0 0.0
        %559 = vmatprep.subr.mxu0 0.0
        %560 = vmatpush2.msra.mxu0 0.0
        %561 = vmatprep.subr.mxu0 0.0
        %562 = vmatpush2.msra.mxu0 0.0
        %563 = vmatprep.subr.mxu0 0.0
        %564 = vmatpush2.msra.mxu0 0.0
        %565 = vmatprep.subr.mxu0 0.0
        %566 = vmatpush2.msra.mxu0 0.0
        %567 = vmatprep.mubr.f32.mxu0 0.0
        %568 = vmatmul.mubr.f32.gmra.mxu0 %v310
        %v569 = vpop.f32.mrf.mxu0
        %v570 = vadd.f32 0.0, %v569
        %v571 = vpop.f32.mrf.mxu0
        %572 = vdwg.mxu0
        %v573 = vadd.f32 %v483, %v570
        %574 = vst [vmem:[%s204] sm:$0xff] %v573
        %575 = vadd.xlane.f32.xlu0 %v573
        %v576 = vpop.xlane.xlu0 %575
        %v577 = vmul.f32 %v576, 0.0078125
        %v578 = vsub.f32 %v573, %v577
        %v579 = vmul.f32 %v578, %v578
        %580 = vadd.xlane.f32.xlu0 %v579
        %v581 = vpop.xlane.xlu0 %580
        %vm582 = vcmask 7168
        %v583 = vsel %vm582, %v577, %v581
        %vm584 = vcmask 15360
        %585 = vst.msk [vmem:[%s218] sm:$0xff] %vm584, %v583
        %s586 = sand.u32 %s96, 1
        %s587 = scalar_lea.sflag [#allocation4], %s586
        %s588 = sand.u32 %s96, 1
        %s589 = smul.addr %s588, 8
        %s590 = scalar_lea.vmem [#allocation5], %s589
        %p591 = scmp.lt.s32.totalorder %s20, 3
        %s592 = scalar_select %p591, %s20, 3
        %s593 = smul.addr %s592, 8
        %s594 = scalar_lea.vmem %s4, %s593
        // Predicated region
        $region37: #{tpu_custom_call.1} parent=31 // pred_check
          %p595 = pneg %p106
        $region38: #{tpu_custom_call.1} parent=31 // pred_check_branch
          %597 = sbr.rel (%p595) target = $region40
        $region39: #{tpu_custom_call.1} parent=31 // pred_region
          %s599 = ssub.s32 128, 128
          %600 = vsyncadd %s587, %s599
          %s601 = smul.addr %s20, 128
          %s602 = scalar_lea.hbm %s3, %s601
          %s604 = sshll.u32 %s590, 4
          %s605 = int_to_ptr.vmem [resolvable:$true] %s604
          %607 = dma.vmem_to_hbm [thread:$0]  %s605, 128, %s602, %s587
        $region40: #{tpu_custom_call.1} parent=31 // pred_fallthru
          _
        // Predicated region
        $region41: #{tpu_custom_call.1} parent=31 // pred_check
          %p608 = pneg %p132
        $region42: #{tpu_custom_call.1} parent=31 // pred_check_branch
          %610 = sbr.rel (%p608) target = $region44
        $region43: #{tpu_custom_call.1} parent=31 // pred_region
          _
        $region44: #{tpu_custom_call.1} parent=31 // pred_fallthru
          _
      $region32: #{tpu_custom_call.1} parent=5 // pred_fallthru
        _
      %p611 = scmp.le.s32.totalorder 2, %s15
      // Predicated region
      $region45: #{tpu_custom_call.1} parent=5 // pred_check
        %p612 = pneg %p611
      $region46: #{tpu_custom_call.1} parent=5 // pred_check_branch
        %614 = sbr.rel (%p612) target = $region48
      $region47: #{tpu_custom_call.1} parent=5 // pred_region
        %s615 = ssub.s32 %s15, 2
        // Predicated region
        $region49: #{tpu_custom_call.1} parent=47 // pred_check
          %p616 = pneg %p112
        $region50: #{tpu_custom_call.1} parent=47 // pred_check_branch
          %618 = sbr.rel (%p616) target = $region52
        $region51: #{tpu_custom_call.1} parent=47 // pred_region
          %s619 = sand.u32 %s97, 1
          %s620 = scalar_lea.sflag [#allocation4], %s619
          %s621 = sand.u32 %s97, 1
          %s622 = smul.addr %s621, 8
          %s623 = scalar_lea.vmem [#allocation5], %s622
          %624 = dma.done %s620, 128
        $region52: #{tpu_custom_call.1} parent=47 // pred_fallthru
          _
        // Predicated region
        $region53: #{tpu_custom_call.1} parent=47 // pred_check
          %p625 = pneg %p138
        $region54: #{tpu_custom_call.1} parent=47 // pred_check_branch
          %627 = sbr.rel (%p625) target = $region56
        $region55: #{tpu_custom_call.1} parent=47 // pred_region
          %p628 = scmp.lt.s32.totalorder %s21, 3
          %s629 = scalar_select %p628, %s21, 3
          %s630 = smul.addr %s629, 8
          %s631 = scalar_lea.vmem %s4, %s630
        $region56: #{tpu_custom_call.1} parent=47 // pred_fallthru
          _
      $region48: #{tpu_custom_call.1} parent=5 // pred_fallthru
        _
    $region6: #{tpu_custom_call.1} parent=1 // loop_footer
      %s19 = sadd.s32 1, %s15
    $region7: #{tpu_custom_call.1} parent=1 // loop_footer_branch
      %14 = sbr.rel target = $region3
    $region8: #{tpu_custom_call.1} parent=1 // loop_exit
      _
    %632 = vsyncpa [#allocation3], 1
    %s633 = scalar_lea.sflag [#allocation3], 1
    %634 = vsyncpa %s633, 1
    %635 = vsyncpa [#allocation4], 1
    %s636 = scalar_lea.sflag [#allocation4], 1
    %637 = vsyncpa %s636, 1

</llo_original>
